<compile_context>
chip_gen: v5e
topology: v5e:2x2
jax: 0.10.0
libtpu: 0.0.40
codegen_flags: <defaults>
</compile_context>

<pallas_src>
import jax
import jax.numpy as jnp
from jax.experimental import pallas as pl
from jax.experimental.pallas import tpu as pltpu


def _tree_sum(terms):
    """Balanced-tree sum of a list of equally-shaped arrays (shorter dep chain)."""
    terms = list(terms)
    while len(terms) > 1:
        nxt = [terms[i] + terms[i + 1] for i in range(0, len(terms) - 1, 2)]
        if len(terms) % 2:
            nxt.append(terms[-1])
        terms = nxt
    return terms[0]


def rnn_forward_kernel(tok_ref, proj_ref, whh_t_ref, wc_t_ref, bc_ref, out_ref):
    """Fused embedding gather + Elman RNN (tanh, no bias) + Linear classifier.

    tok_ref:   (S*B_pad, 1) int32  time-major flattened token ids
    proj_ref:  (V, H)              precomputed Emb @ W_ih^T (parameter-only)
    whh_t_ref: (H, H)              W_hh^T
    wc_t_ref:  (H, 128)            classifier weight^T, columns zero-padded
    bc_ref:    (1, 128)            classifier bias, zero-padded
    out_ref:   (B_pad, 128)        lane-dense logits slab
    """
    SB = tok_ref.shape[0]
    V, H = proj_ref.shape
    B = out_ref.shape[0]
    S = SB // B

    # Gather + input projection for ALL timesteps in one MXU matmul:
    #   xw[(t, b), :] = proj[tok[t, b], :]
    tok = tok_ref[...]                                           # (S*B, 1)
    vocab_ids = jax.lax.broadcasted_iota(jnp.int32, (SB, V), 1)  # (S*B, V)
    one_hot = (tok == vocab_ids).astype(jnp.float32)             # (S*B, V)
    xw = jnp.dot(one_hot, proj_ref[...],
                 preferred_element_type=jnp.float32)             # (S*B, H)

    # Hoist the loop-invariant sublane broadcasts of W_hh^T rows.
    whh_t = whh_t_ref[...]
    w_rows = [jnp.broadcast_to(whh_t[k:k + 1, :], (B, H)) for k in range(H)]

    # Serial recurrence, fully unrolled (S small & static). Each step is H
    # broadcast-multiply-adds on the VPU plus a tanh on the EUP, so the MXU's
    # fill/drain latency is not on the dependent chain.
    h = jnp.zeros((B, H), dtype=jnp.float32)
    for t in range(S):
        x_t = xw[t * B:(t + 1) * B, :]          # static, 8-sublane-aligned slice
        terms = [x_t] + [h[:, k:k + 1] * w_rows[k] for k in range(H)]
        h = jnp.tanh(_tree_sum(terms))

    # Classifier: (B_pad, H) @ (H, 128) -> lane-dense, unmasked store.
    out_ref[...] = (jnp.dot(h, wc_t_ref[...],
                            preferred_element_type=jnp.float32)
                    + bc_ref[...])


def torch_rnn_forward(tokens, emb_table, w_ih, w_hh, w_c, b_c):
    """Equivalent of TorchRNN.forward(x) with y=None (returns y_pred)."""
    B, S = tokens.shape
    H = w_hh.shape[0]
    C = H + 1
    B_pad = ((B + 7) // 8) * 8          # full sublane tile
    C_pad = 128                         # lane-dense output slab

    # Parameter-only work stays outside the kernel: full-table input
    # projection (V, H) and zero-padding of the classifier parameters.
    proj = jnp.dot(emb_table.astype(jnp.float32),
                   jnp.transpose(w_ih).astype(jnp.float32))      # (V, H)
    wc_t = jnp.zeros((H, C_pad), jnp.float32).at[:, :C].set(
        jnp.transpose(w_c).astype(jnp.float32))
    bc = jnp.zeros((1, C_pad), jnp.float32).at[:, :C].set(
        b_c.astype(jnp.float32))

    # Pad the batch to the sublane tile; padded rows (token id 0) are
    # discarded below.
    tok = tokens.astype(jnp.int32)
    if B_pad != B:
        tok = jnp.concatenate(
            [tok, jnp.zeros((B_pad - B, S), jnp.int32)], axis=0)
    tok_tm = jnp.transpose(tok).reshape(S * B_pad, 1)            # time-major

    # TODO(synk): for production batch sizes, switch the recurrence to a
    # batch-on-lanes (H, B) layout and add a parallel batch grid so v7x's two
    # TensorCores split the work; irrelevant at B_pad=8 (<20 KB resident).
    vmem = pl.BlockSpec(memory_space=pltpu.MemorySpace.VMEM)
    out = pl.pallas_call(
        rnn_forward_kernel,
        out_shape=jax.ShapeDtypeStruct((B_pad, C_pad), jnp.float32),
        in_specs=[vmem] * 5,
        out_specs=vmem,
    )(tok_tm, proj, jnp.transpose(w_hh).astype(jnp.float32), wc_t, bc)

    return out[:B, :C]


def jax_reference(tokens, emb_table, w_ih, w_hh, w_c, b_c):
    x = jnp.take(emb_table, tokens, axis=0)  # (B, S, D)
    B, S, D = x.shape
    H = w_hh.shape[0]

    def step(h, x_t):
        h_new = jnp.tanh(x_t @ w_ih.T + h @ w_hh.T)
        return h_new, None

    h_final, _ = jax.lax.scan(step, jnp.zeros((B, H), jnp.float32),
                              jnp.transpose(x, (1, 0, 2)))
    return h_final @ w_c.T + b_c


if __name__ == "__main__":
    # Module hyper-parameters (small, consistent with the forward pass):
    vocab_size = 30        # len(vocab)
    vector_dim = 32        # embedding / RNN input dim
    sentence_length = 8    # seq length == RNN hidden size (per module def)
    batch = 4

    key = jax.random.PRNGKey(0)
    k_emb, k_ih, k_hh, k_wc, k_bc, k_tok = jax.random.split(key, 6)

    # Deterministic synthetic parameters (shapes from TorchRNN.__init__).
    emb_table = jax.random.normal(k_emb, (vocab_size, vector_dim), jnp.float32) * 0.1
    w_ih = jax.random.normal(k_ih, (sentence_length, vector_dim), jnp.float32) * 0.1
    w_hh = jax.random.normal(k_hh, (sentence_length, sentence_length), jnp.float32) * 0.1
    w_c = jax.random.normal(k_wc, (sentence_length + 1, sentence_length), jnp.float32) * 0.1
    b_c = jax.random.normal(k_bc, (sentence_length + 1,), jnp.float32) * 0.1

    tokens = jax.random.randint(k_tok, (batch, sentence_length), 0, vocab_size,
                                dtype=jnp.int32)

    y_pred = torch_rnn_forward(tokens, emb_table, w_ih, w_hh, w_c, b_c)
    y_pred = jax.block_until_ready(y_pred)

    y_ref = jax_reference(tokens, emb_table, w_ih, w_hh, w_c, b_c)
    assert y_pred.shape == (batch, sentence_length + 1)
    assert jnp.allclose(y_pred, y_ref, atol=1e-5, rtol=1e-5)

    # TODO(synk): training branch (cross_entropy loss when y is provided) is
    # host-side glue and not part of the Pallas kernel.
    print("KERNEL_OK")
</pallas_src>

<mosaic_0001>
module attributes {stable_mosaic.version = 11 : i64} {
  func.func @rnn_forward_kernel(%arg0: memref<64x1xi32, #tpu.memory_space<vmem>>, %arg1: memref<30x8xf32, #tpu.memory_space<vmem>>, %arg2: memref<8x8xf32, #tpu.memory_space<vmem>>, %arg3: memref<8x128xf32, #tpu.memory_space<vmem>>, %arg4: memref<1x128xf32, #tpu.memory_space<vmem>>, %arg5: memref<8x128xf32, #tpu.memory_space<vmem>>) attributes {dimension_semantics = [], scalar_prefetch = 0 : i64, scratch_operands = 0 : i64, tpu.core_type = #tpu.core_type<tc>} {
    %c0 = arith.constant 0 : index
    %c0_0 = arith.constant 0 : index
    %0 = vector.load %arg0[%c0, %c0_0] : memref<64x1xi32, #tpu.memory_space<vmem>>, vector<64x1xi32>
    %1 = tpu.iota {dimensions = array<i32: 1>} : vector<64x30xi32>
    %2 = vector.broadcast %0 : vector<64x1xi32> to vector<64x30xi32>
    %3 = arith.cmpi eq, %2, %1 : vector<64x30xi32>
    %4 = arith.extui %3 : vector<64x30xi1> to vector<64x30xi32>
    %5 = arith.sitofp %4 : vector<64x30xi32> to vector<64x30xf32>
    %c0_1 = arith.constant 0 : index
    %c0_2 = arith.constant 0 : index
    %6 = vector.load %arg1[%c0_1, %c0_2] : memref<30x8xf32, #tpu.memory_space<vmem>>, vector<30x8xf32>
    %cst = arith.constant dense<0.000000e+00> : vector<64x8xf32>
    %7 = tpu.matmul %5, %6, %cst {dimension_numbers = #tpu.dot_dimension_numbers<[1], [0], [0], [1], [0, 0, 1, 1], [], []>} : vector<64x30xf32>, vector<30x8xf32>, vector<64x8xf32> -> vector<64x8xf32>
    %c0_3 = arith.constant 0 : index
    %c0_4 = arith.constant 0 : index
    %8 = vector.load %arg2[%c0_3, %c0_4] : memref<8x8xf32, #tpu.memory_space<vmem>>, vector<8x8xf32>
    %9 = vector.extract_strided_slice %8 {offsets = [0, 0], sizes = [1, 8], strides = [1, 1]} : vector<8x8xf32> to vector<1x8xf32>
    %10 = vector.shape_cast %9 : vector<1x8xf32> to vector<1x8xf32>
    %11 = vector.broadcast %10 : vector<1x8xf32> to vector<8x8xf32>
    %12 = vector.extract_strided_slice %8 {offsets = [1, 0], sizes = [1, 8], strides = [1, 1]} : vector<8x8xf32> to vector<1x8xf32>
    %13 = vector.shape_cast %12 : vector<1x8xf32> to vector<1x8xf32>
    %14 = vector.broadcast %13 : vector<1x8xf32> to vector<8x8xf32>
    %15 = vector.extract_strided_slice %8 {offsets = [2, 0], sizes = [1, 8], strides = [1, 1]} : vector<8x8xf32> to vector<1x8xf32>
    %16 = vector.shape_cast %15 : vector<1x8xf32> to vector<1x8xf32>
    %17 = vector.broadcast %16 : vector<1x8xf32> to vector<8x8xf32>
    %18 = vector.extract_strided_slice %8 {offsets = [3, 0], sizes = [1, 8], strides = [1, 1]} : vector<8x8xf32> to vector<1x8xf32>
    %19 = vector.shape_cast %18 : vector<1x8xf32> to vector<1x8xf32>
    %20 = vector.broadcast %19 : vector<1x8xf32> to vector<8x8xf32>
    %21 = vector.extract_strided_slice %8 {offsets = [4, 0], sizes = [1, 8], strides = [1, 1]} : vector<8x8xf32> to vector<1x8xf32>
    %22 = vector.shape_cast %21 : vector<1x8xf32> to vector<1x8xf32>
    %23 = vector.broadcast %22 : vector<1x8xf32> to vector<8x8xf32>
    %24 = vector.extract_strided_slice %8 {offsets = [5, 0], sizes = [1, 8], strides = [1, 1]} : vector<8x8xf32> to vector<1x8xf32>
    %25 = vector.shape_cast %24 : vector<1x8xf32> to vector<1x8xf32>
    %26 = vector.broadcast %25 : vector<1x8xf32> to vector<8x8xf32>
    %27 = vector.extract_strided_slice %8 {offsets = [6, 0], sizes = [1, 8], strides = [1, 1]} : vector<8x8xf32> to vector<1x8xf32>
    %28 = vector.shape_cast %27 : vector<1x8xf32> to vector<1x8xf32>
    %29 = vector.broadcast %28 : vector<1x8xf32> to vector<8x8xf32>
    %30 = vector.extract_strided_slice %8 {offsets = [7, 0], sizes = [1, 8], strides = [1, 1]} : vector<8x8xf32> to vector<1x8xf32>
    %31 = vector.shape_cast %30 : vector<1x8xf32> to vector<1x8xf32>
    %32 = vector.broadcast %31 : vector<1x8xf32> to vector<8x8xf32>
    %cst_5 = arith.constant 0.000000e+00 : f32
    %33 = vector.broadcast %cst_5 : f32 to vector<8x8xf32>
    %34 = vector.extract_strided_slice %7 {offsets = [0, 0], sizes = [8, 8], strides = [1, 1]} : vector<64x8xf32> to vector<8x8xf32>
    %35 = vector.extract_strided_slice %33 {offsets = [0, 0], sizes = [8, 1], strides = [1, 1]} : vector<8x8xf32> to vector<8x1xf32>
    %36 = vector.broadcast %35 : vector<8x1xf32> to vector<8x8xf32>
    %37 = arith.mulf %36, %11 : vector<8x8xf32>
    %38 = vector.extract_strided_slice %33 {offsets = [0, 1], sizes = [8, 1], strides = [1, 1]} : vector<8x8xf32> to vector<8x1xf32>
    %39 = vector.broadcast %38 : vector<8x1xf32> to vector<8x8xf32>
    %40 = arith.mulf %39, %14 : vector<8x8xf32>
    %41 = vector.extract_strided_slice %33 {offsets = [0, 2], sizes = [8, 1], strides = [1, 1]} : vector<8x8xf32> to vector<8x1xf32>
    %42 = vector.broadcast %41 : vector<8x1xf32> to vector<8x8xf32>
    %43 = arith.mulf %42, %17 : vector<8x8xf32>
    %44 = vector.extract_strided_slice %33 {offsets = [0, 3], sizes = [8, 1], strides = [1, 1]} : vector<8x8xf32> to vector<8x1xf32>
    %45 = vector.broadcast %44 : vector<8x1xf32> to vector<8x8xf32>
    %46 = arith.mulf %45, %20 : vector<8x8xf32>
    %47 = vector.extract_strided_slice %33 {offsets = [0, 4], sizes = [8, 1], strides = [1, 1]} : vector<8x8xf32> to vector<8x1xf32>
    %48 = vector.broadcast %47 : vector<8x1xf32> to vector<8x8xf32>
    %49 = arith.mulf %48, %23 : vector<8x8xf32>
    %50 = vector.extract_strided_slice %33 {offsets = [0, 5], sizes = [8, 1], strides = [1, 1]} : vector<8x8xf32> to vector<8x1xf32>
    %51 = vector.broadcast %50 : vector<8x1xf32> to vector<8x8xf32>
    %52 = arith.mulf %51, %26 : vector<8x8xf32>
    %53 = vector.extract_strided_slice %33 {offsets = [0, 6], sizes = [8, 1], strides = [1, 1]} : vector<8x8xf32> to vector<8x1xf32>
    %54 = vector.broadcast %53 : vector<8x1xf32> to vector<8x8xf32>
    %55 = arith.mulf %54, %29 : vector<8x8xf32>
    %56 = vector.extract_strided_slice %33 {offsets = [0, 7], sizes = [8, 1], strides = [1, 1]} : vector<8x8xf32> to vector<8x1xf32>
    %57 = vector.broadcast %56 : vector<8x1xf32> to vector<8x8xf32>
    %58 = arith.mulf %57, %32 : vector<8x8xf32>
    %59 = arith.addf %34, %37 : vector<8x8xf32>
    %60 = arith.addf %40, %43 : vector<8x8xf32>
    %61 = arith.addf %46, %49 : vector<8x8xf32>
    %62 = arith.addf %52, %55 : vector<8x8xf32>
    %63 = arith.addf %59, %60 : vector<8x8xf32>
    %64 = arith.addf %61, %62 : vector<8x8xf32>
    %65 = arith.addf %63, %64 : vector<8x8xf32>
    %66 = arith.addf %65, %58 : vector<8x8xf32>
    %67 = math.tanh %66 : vector<8x8xf32>
    %68 = vector.extract_strided_slice %7 {offsets = [8, 0], sizes = [8, 8], strides = [1, 1]} : vector<64x8xf32> to vector<8x8xf32>
    %69 = vector.extract_strided_slice %67 {offsets = [0, 0], sizes = [8, 1], strides = [1, 1]} : vector<8x8xf32> to vector<8x1xf32>
    %70 = vector.broadcast %69 : vector<8x1xf32> to vector<8x8xf32>
    %71 = arith.mulf %70, %11 : vector<8x8xf32>
    %72 = vector.extract_strided_slice %67 {offsets = [0, 1], sizes = [8, 1], strides = [1, 1]} : vector<8x8xf32> to vector<8x1xf32>
    %73 = vector.broadcast %72 : vector<8x1xf32> to vector<8x8xf32>
    %74 = arith.mulf %73, %14 : vector<8x8xf32>
    %75 = vector.extract_strided_slice %67 {offsets = [0, 2], sizes = [8, 1], strides = [1, 1]} : vector<8x8xf32> to vector<8x1xf32>
    %76 = vector.broadcast %75 : vector<8x1xf32> to vector<8x8xf32>
    %77 = arith.mulf %76, %17 : vector<8x8xf32>
    %78 = vector.extract_strided_slice %67 {offsets = [0, 3], sizes = [8, 1], strides = [1, 1]} : vector<8x8xf32> to vector<8x1xf32>
    %79 = vector.broadcast %78 : vector<8x1xf32> to vector<8x8xf32>
    %80 = arith.mulf %79, %20 : vector<8x8xf32>
    %81 = vector.extract_strided_slice %67 {offsets = [0, 4], sizes = [8, 1], strides = [1, 1]} : vector<8x8xf32> to vector<8x1xf32>
    %82 = vector.broadcast %81 : vector<8x1xf32> to vector<8x8xf32>
    %83 = arith.mulf %82, %23 : vector<8x8xf32>
    %84 = vector.extract_strided_slice %67 {offsets = [0, 5], sizes = [8, 1], strides = [1, 1]} : vector<8x8xf32> to vector<8x1xf32>
    %85 = vector.broadcast %84 : vector<8x1xf32> to vector<8x8xf32>
    %86 = arith.mulf %85, %26 : vector<8x8xf32>
    %87 = vector.extract_strided_slice %67 {offsets = [0, 6], sizes = [8, 1], strides = [1, 1]} : vector<8x8xf32> to vector<8x1xf32>
    %88 = vector.broadcast %87 : vector<8x1xf32> to vector<8x8xf32>
    %89 = arith.mulf %88, %29 : vector<8x8xf32>
    %90 = vector.extract_strided_slice %67 {offsets = [0, 7], sizes = [8, 1], strides = [1, 1]} : vector<8x8xf32> to vector<8x1xf32>
    %91 = vector.broadcast %90 : vector<8x1xf32> to vector<8x8xf32>
    %92 = arith.mulf %91, %32 : vector<8x8xf32>
    %93 = arith.addf %68, %71 : vector<8x8xf32>
    %94 = arith.addf %74, %77 : vector<8x8xf32>
    %95 = arith.addf %80, %83 : vector<8x8xf32>
    %96 = arith.addf %86, %89 : vector<8x8xf32>
    %97 = arith.addf %93, %94 : vector<8x8xf32>
    %98 = arith.addf %95, %96 : vector<8x8xf32>
    %99 = arith.addf %97, %98 : vector<8x8xf32>
    %100 = arith.addf %99, %92 : vector<8x8xf32>
    %101 = math.tanh %100 : vector<8x8xf32>
    %102 = vector.extract_strided_slice %7 {offsets = [16, 0], sizes = [8, 8], strides = [1, 1]} : vector<64x8xf32> to vector<8x8xf32>
    %103 = vector.extract_strided_slice %101 {offsets = [0, 0], sizes = [8, 1], strides = [1, 1]} : vector<8x8xf32> to vector<8x1xf32>
    %104 = vector.broadcast %103 : vector<8x1xf32> to vector<8x8xf32>
    %105 = arith.mulf %104, %11 : vector<8x8xf32>
    %106 = vector.extract_strided_slice %101 {offsets = [0, 1], sizes = [8, 1], strides = [1, 1]} : vector<8x8xf32> to vector<8x1xf32>
    %107 = vector.broadcast %106 : vector<8x1xf32> to vector<8x8xf32>
    %108 = arith.mulf %107, %14 : vector<8x8xf32>
    %109 = vector.extract_strided_slice %101 {offsets = [0, 2], sizes = [8, 1], strides = [1, 1]} : vector<8x8xf32> to vector<8x1xf32>
    %110 = vector.broadcast %109 : vector<8x1xf32> to vector<8x8xf32>
    %111 = arith.mulf %110, %17 : vector<8x8xf32>
    %112 = vector.extract_strided_slice %101 {offsets = [0, 3], sizes = [8, 1], strides = [1, 1]} : vector<8x8xf32> to vector<8x1xf32>
    %113 = vector.broadcast %112 : vector<8x1xf32> to vector<8x8xf32>
    %114 = arith.mulf %113, %20 : vector<8x8xf32>
    %115 = vector.extract_strided_slice %101 {offsets = [0, 4], sizes = [8, 1], strides = [1, 1]} : vector<8x8xf32> to vector<8x1xf32>
    %116 = vector.broadcast %115 : vector<8x1xf32> to vector<8x8xf32>
    %117 = arith.mulf %116, %23 : vector<8x8xf32>
    %118 = vector.extract_strided_slice %101 {offsets = [0, 5], sizes = [8, 1], strides = [1, 1]} : vector<8x8xf32> to vector<8x1xf32>
    %119 = vector.broadcast %118 : vector<8x1xf32> to vector<8x8xf32>
    %120 = arith.mulf %119, %26 : vector<8x8xf32>
    %121 = vector.extract_strided_slice %101 {offsets = [0, 6], sizes = [8, 1], strides = [1, 1]} : vector<8x8xf32> to vector<8x1xf32>
    %122 = vector.broadcast %121 : vector<8x1xf32> to vector<8x8xf32>
    %123 = arith.mulf %122, %29 : vector<8x8xf32>
    %124 = vector.extract_strided_slice %101 {offsets = [0, 7], sizes = [8, 1], strides = [1, 1]} : vector<8x8xf32> to vector<8x1xf32>
    %125 = vector.broadcast %124 : vector<8x1xf32> to vector<8x8xf32>
    %126 = arith.mulf %125, %32 : vector<8x8xf32>
    %127 = arith.addf %102, %105 : vector<8x8xf32>
    %128 = arith.addf %108, %111 : vector<8x8xf32>
    %129 = arith.addf %114, %117 : vector<8x8xf32>
    %130 = arith.addf %120, %123 : vector<8x8xf32>
    %131 = arith.addf %127, %128 : vector<8x8xf32>
    %132 = arith.addf %129, %130 : vector<8x8xf32>
    %133 = arith.addf %131, %132 : vector<8x8xf32>
    %134 = arith.addf %133, %126 : vector<8x8xf32>
    %135 = math.tanh %134 : vector<8x8xf32>
    %136 = vector.extract_strided_slice %7 {offsets = [24, 0], sizes = [8, 8], strides = [1, 1]} : vector<64x8xf32> to vector<8x8xf32>
    %137 = vector.extract_strided_slice %135 {offsets = [0, 0], sizes = [8, 1], strides = [1, 1]} : vector<8x8xf32> to vector<8x1xf32>
    %138 = vector.broadcast %137 : vector<8x1xf32> to vector<8x8xf32>
    %139 = arith.mulf %138, %11 : vector<8x8xf32>
    %140 = vector.extract_strided_slice %135 {offsets = [0, 1], sizes = [8, 1], strides = [1, 1]} : vector<8x8xf32> to vector<8x1xf32>
    %141 = vector.broadcast %140 : vector<8x1xf32> to vector<8x8xf32>
    %142 = arith.mulf %141, %14 : vector<8x8xf32>
    %143 = vector.extract_strided_slice %135 {offsets = [0, 2], sizes = [8, 1], strides = [1, 1]} : vector<8x8xf32> to vector<8x1xf32>
    %144 = vector.broadcast %143 : vector<8x1xf32> to vector<8x8xf32>
    %145 = arith.mulf %144, %17 : vector<8x8xf32>
    %146 = vector.extract_strided_slice %135 {offsets = [0, 3], sizes = [8, 1], strides = [1, 1]} : vector<8x8xf32> to vector<8x1xf32>
    %147 = vector.broadcast %146 : vector<8x1xf32> to vector<8x8xf32>
    %148 = arith.mulf %147, %20 : vector<8x8xf32>
    %149 = vector.extract_strided_slice %135 {offsets = [0, 4], sizes = [8, 1], strides = [1, 1]} : vector<8x8xf32> to vector<8x1xf32>
    %150 = vector.broadcast %149 : vector<8x1xf32> to vector<8x8xf32>
    %151 = arith.mulf %150, %23 : vector<8x8xf32>
    %152 = vector.extract_strided_slice %135 {offsets = [0, 5], sizes = [8, 1], strides = [1, 1]} : vector<8x8xf32> to vector<8x1xf32>
    %153 = vector.broadcast %152 : vector<8x1xf32> to vector<8x8xf32>
    %154 = arith.mulf %153, %26 : vector<8x8xf32>
    %155 = vector.extract_strided_slice %135 {offsets = [0, 6], sizes = [8, 1], strides = [1, 1]} : vector<8x8xf32> to vector<8x1xf32>
    %156 = vector.broadcast %155 : vector<8x1xf32> to vector<8x8xf32>
    %157 = arith.mulf %156, %29 : vector<8x8xf32>
    %158 = vector.extract_strided_slice %135 {offsets = [0, 7], sizes = [8, 1], strides = [1, 1]} : vector<8x8xf32> to vector<8x1xf32>
    %159 = vector.broadcast %158 : vector<8x1xf32> to vector<8x8xf32>
    %160 = arith.mulf %159, %32 : vector<8x8xf32>
    %161 = arith.addf %136, %139 : vector<8x8xf32>
    %162 = arith.addf %142, %145 : vector<8x8xf32>
    %163 = arith.addf %148, %151 : vector<8x8xf32>
    %164 = arith.addf %154, %157 : vector<8x8xf32>
    %165 = arith.addf %161, %162 : vector<8x8xf32>
    %166 = arith.addf %163, %164 : vector<8x8xf32>
    %167 = arith.addf %165, %166 : vector<8x8xf32>
    %168 = arith.addf %167, %160 : vector<8x8xf32>
    %169 = math.tanh %168 : vector<8x8xf32>
    %170 = vector.extract_strided_slice %7 {offsets = [32, 0], sizes = [8, 8], strides = [1, 1]} : vector<64x8xf32> to vector<8x8xf32>
    %171 = vector.extract_strided_slice %169 {offsets = [0, 0], sizes = [8, 1], strides = [1, 1]} : vector<8x8xf32> to vector<8x1xf32>
    %172 = vector.broadcast %171 : vector<8x1xf32> to vector<8x8xf32>
    %173 = arith.mulf %172, %11 : vector<8x8xf32>
    %174 = vector.extract_strided_slice %169 {offsets = [0, 1], sizes = [8, 1], strides = [1, 1]} : vector<8x8xf32> to vector<8x1xf32>
    %175 = vector.broadcast %174 : vector<8x1xf32> to vector<8x8xf32>
    %176 = arith.mulf %175, %14 : vector<8x8xf32>
    %177 = vector.extract_strided_slice %169 {offsets = [0, 2], sizes = [8, 1], strides = [1, 1]} : vector<8x8xf32> to vector<8x1xf32>
    %178 = vector.broadcast %177 : vector<8x1xf32> to vector<8x8xf32>
    %179 = arith.mulf %178, %17 : vector<8x8xf32>
    %180 = vector.extract_strided_slice %169 {offsets = [0, 3], sizes = [8, 1], strides = [1, 1]} : vector<8x8xf32> to vector<8x1xf32>
    %181 = vector.broadcast %180 : vector<8x1xf32> to vector<8x8xf32>
    %182 = arith.mulf %181, %20 : vector<8x8xf32>
    %183 = vector.extract_strided_slice %169 {offsets = [0, 4], sizes = [8, 1], strides = [1, 1]} : vector<8x8xf32> to vector<8x1xf32>
    %184 = vector.broadcast %183 : vector<8x1xf32> to vector<8x8xf32>
    %185 = arith.mulf %184, %23 : vector<8x8xf32>
    %186 = vector.extract_strided_slice %169 {offsets = [0, 5], sizes = [8, 1], strides = [1, 1]} : vector<8x8xf32> to vector<8x1xf32>
    %187 = vector.broadcast %186 : vector<8x1xf32> to vector<8x8xf32>
    %188 = arith.mulf %187, %26 : vector<8x8xf32>
    %189 = vector.extract_strided_slice %169 {offsets = [0, 6], sizes = [8, 1], strides = [1, 1]} : vector<8x8xf32> to vector<8x1xf32>
    %190 = vector.broadcast %189 : vector<8x1xf32> to vector<8x8xf32>
    %191 = arith.mulf %190, %29 : vector<8x8xf32>
    %192 = vector.extract_strided_slice %169 {offsets = [0, 7], sizes = [8, 1], strides = [1, 1]} : vector<8x8xf32> to vector<8x1xf32>
    %193 = vector.broadcast %192 : vector<8x1xf32> to vector<8x8xf32>
    %194 = arith.mulf %193, %32 : vector<8x8xf32>
    %195 = arith.addf %170, %173 : vector<8x8xf32>
    %196 = arith.addf %176, %179 : vector<8x8xf32>
    %197 = arith.addf %182, %185 : vector<8x8xf32>
    %198 = arith.addf %188, %191 : vector<8x8xf32>
    %199 = arith.addf %195, %196 : vector<8x8xf32>
    %200 = arith.addf %197, %198 : vector<8x8xf32>
    %201 = arith.addf %199, %200 : vector<8x8xf32>
    %202 = arith.addf %201, %194 : vector<8x8xf32>
    %203 = math.tanh %202 : vector<8x8xf32>
    %204 = vector.extract_strided_slice %7 {offsets = [40, 0], sizes = [8, 8], strides = [1, 1]} : vector<64x8xf32> to vector<8x8xf32>
    %205 = vector.extract_strided_slice %203 {offsets = [0, 0], sizes = [8, 1], strides = [1, 1]} : vector<8x8xf32> to vector<8x1xf32>
    %206 = vector.broadcast %205 : vector<8x1xf32> to vector<8x8xf32>
    %207 = arith.mulf %206, %11 : vector<8x8xf32>
    %208 = vector.extract_strided_slice %203 {offsets = [0, 1], sizes = [8, 1], strides = [1, 1]} : vector<8x8xf32> to vector<8x1xf32>
    %209 = vector.broadcast %208 : vector<8x1xf32> to vector<8x8xf32>
    %210 = arith.mulf %209, %14 : vector<8x8xf32>
    %211 = vector.extract_strided_slice %203 {offsets = [0, 2], sizes = [8, 1], strides = [1, 1]} : vector<8x8xf32> to vector<8x1xf32>
    %212 = vector.broadcast %211 : vector<8x1xf32> to vector<8x8xf32>
    %213 = arith.mulf %212, %17 : vector<8x8xf32>
    %214 = vector.extract_strided_slice %203 {offsets = [0, 3], sizes = [8, 1], strides = [1, 1]} : vector<8x8xf32> to vector<8x1xf32>
    %215 = vector.broadcast %214 : vector<8x1xf32> to vector<8x8xf32>
    %216 = arith.mulf %215, %20 : vector<8x8xf32>
    %217 = vector.extract_strided_slice %203 {offsets = [0, 4], sizes = [8, 1], strides = [1, 1]} : vector<8x8xf32> to vector<8x1xf32>
    %218 = vector.broadcast %217 : vector<8x1xf32> to vector<8x8xf32>
    %219 = arith.mulf %218, %23 : vector<8x8xf32>
    %220 = vector.extract_strided_slice %203 {offsets = [0, 5], sizes = [8, 1], strides = [1, 1]} : vector<8x8xf32> to vector<8x1xf32>
    %221 = vector.broadcast %220 : vector<8x1xf32> to vector<8x8xf32>
    %222 = arith.mulf %221, %26 : vector<8x8xf32>
    %223 = vector.extract_strided_slice %203 {offsets = [0, 6], sizes = [8, 1], strides = [1, 1]} : vector<8x8xf32> to vector<8x1xf32>
    %224 = vector.broadcast %223 : vector<8x1xf32> to vector<8x8xf32>
    %225 = arith.mulf %224, %29 : vector<8x8xf32>
    %226 = vector.extract_strided_slice %203 {offsets = [0, 7], sizes = [8, 1], strides = [1, 1]} : vector<8x8xf32> to vector<8x1xf32>
    %227 = vector.broadcast %226 : vector<8x1xf32> to vector<8x8xf32>
    %228 = arith.mulf %227, %32 : vector<8x8xf32>
    %229 = arith.addf %204, %207 : vector<8x8xf32>
    %230 = arith.addf %210, %213 : vector<8x8xf32>
    %231 = arith.addf %216, %219 : vector<8x8xf32>
    %232 = arith.addf %222, %225 : vector<8x8xf32>
    %233 = arith.addf %229, %230 : vector<8x8xf32>
    %234 = arith.addf %231, %232 : vector<8x8xf32>
    %235 = arith.addf %233, %234 : vector<8x8xf32>
    %236 = arith.addf %235, %228 : vector<8x8xf32>
    %237 = math.tanh %236 : vector<8x8xf32>
    %238 = vector.extract_strided_slice %7 {offsets = [48, 0], sizes = [8, 8], strides = [1, 1]} : vector<64x8xf32> to vector<8x8xf32>
    %239 = vector.extract_strided_slice %237 {offsets = [0, 0], sizes = [8, 1], strides = [1, 1]} : vector<8x8xf32> to vector<8x1xf32>
    %240 = vector.broadcast %239 : vector<8x1xf32> to vector<8x8xf32>
    %241 = arith.mulf %240, %11 : vector<8x8xf32>
    %242 = vector.extract_strided_slice %237 {offsets = [0, 1], sizes = [8, 1], strides = [1, 1]} : vector<8x8xf32> to vector<8x1xf32>
    %243 = vector.broadcast %242 : vector<8x1xf32> to vector<8x8xf32>
    %244 = arith.mulf %243, %14 : vector<8x8xf32>
    %245 = vector.extract_strided_slice %237 {offsets = [0, 2], sizes = [8, 1], strides = [1, 1]} : vector<8x8xf32> to vector<8x1xf32>
    %246 = vector.broadcast %245 : vector<8x1xf32> to vector<8x8xf32>
    %247 = arith.mulf %246, %17 : vector<8x8xf32>
    %248 = vector.extract_strided_slice %237 {offsets = [0, 3], sizes = [8, 1], strides = [1, 1]} : vector<8x8xf32> to vector<8x1xf32>
    %249 = vector.broadcast %248 : vector<8x1xf32> to vector<8x8xf32>
    %250 = arith.mulf %249, %20 : vector<8x8xf32>
    %251 = vector.extract_strided_slice %237 {offsets = [0, 4], sizes = [8, 1], strides = [1, 1]} : vector<8x8xf32> to vector<8x1xf32>
    %252 = vector.broadcast %251 : vector<8x1xf32> to vector<8x8xf32>
    %253 = arith.mulf %252, %23 : vector<8x8xf32>
    %254 = vector.extract_strided_slice %237 {offsets = [0, 5], sizes = [8, 1], strides = [1, 1]} : vector<8x8xf32> to vector<8x1xf32>
    %255 = vector.broadcast %254 : vector<8x1xf32> to vector<8x8xf32>
    %256 = arith.mulf %255, %26 : vector<8x8xf32>
    %257 = vector.extract_strided_slice %237 {offsets = [0, 6], sizes = [8, 1], strides = [1, 1]} : vector<8x8xf32> to vector<8x1xf32>
    %258 = vector.broadcast %257 : vector<8x1xf32> to vector<8x8xf32>
    %259 = arith.mulf %258, %29 : vector<8x8xf32>
    %260 = vector.extract_strided_slice %237 {offsets = [0, 7], sizes = [8, 1], strides = [1, 1]} : vector<8x8xf32> to vector<8x1xf32>
    %261 = vector.broadcast %260 : vector<8x1xf32> to vector<8x8xf32>
    %262 = arith.mulf %261, %32 : vector<8x8xf32>
    %263 = arith.addf %238, %241 : vector<8x8xf32>
    %264 = arith.addf %244, %247 : vector<8x8xf32>
    %265 = arith.addf %250, %253 : vector<8x8xf32>
    %266 = arith.addf %256, %259 : vector<8x8xf32>
    %267 = arith.addf %263, %264 : vector<8x8xf32>
    %268 = arith.addf %265, %266 : vector<8x8xf32>
    %269 = arith.addf %267, %268 : vector<8x8xf32>
    %270 = arith.addf %269, %262 : vector<8x8xf32>
    %271 = math.tanh %270 : vector<8x8xf32>
    %272 = vector.extract_strided_slice %7 {offsets = [56, 0], sizes = [8, 8], strides = [1, 1]} : vector<64x8xf32> to vector<8x8xf32>
    %273 = vector.extract_strided_slice %271 {offsets = [0, 0], sizes = [8, 1], strides = [1, 1]} : vector<8x8xf32> to vector<8x1xf32>
    %274 = vector.broadcast %273 : vector<8x1xf32> to vector<8x8xf32>
    %275 = arith.mulf %274, %11 : vector<8x8xf32>
    %276 = vector.extract_strided_slice %271 {offsets = [0, 1], sizes = [8, 1], strides = [1, 1]} : vector<8x8xf32> to vector<8x1xf32>
    %277 = vector.broadcast %276 : vector<8x1xf32> to vector<8x8xf32>
    %278 = arith.mulf %277, %14 : vector<8x8xf32>
    %279 = vector.extract_strided_slice %271 {offsets = [0, 2], sizes = [8, 1], strides = [1, 1]} : vector<8x8xf32> to vector<8x1xf32>
    %280 = vector.broadcast %279 : vector<8x1xf32> to vector<8x8xf32>
    %281 = arith.mulf %280, %17 : vector<8x8xf32>
    %282 = vector.extract_strided_slice %271 {offsets = [0, 3], sizes = [8, 1], strides = [1, 1]} : vector<8x8xf32> to vector<8x1xf32>
    %283 = vector.broadcast %282 : vector<8x1xf32> to vector<8x8xf32>
    %284 = arith.mulf %283, %20 : vector<8x8xf32>
    %285 = vector.extract_strided_slice %271 {offsets = [0, 4], sizes = [8, 1], strides = [1, 1]} : vector<8x8xf32> to vector<8x1xf32>
    %286 = vector.broadcast %285 : vector<8x1xf32> to vector<8x8xf32>
    %287 = arith.mulf %286, %23 : vector<8x8xf32>
    %288 = vector.extract_strided_slice %271 {offsets = [0, 5], sizes = [8, 1], strides = [1, 1]} : vector<8x8xf32> to vector<8x1xf32>
    %289 = vector.broadcast %288 : vector<8x1xf32> to vector<8x8xf32>
    %290 = arith.mulf %289, %26 : vector<8x8xf32>
    %291 = vector.extract_strided_slice %271 {offsets = [0, 6], sizes = [8, 1], strides = [1, 1]} : vector<8x8xf32> to vector<8x1xf32>
    %292 = vector.broadcast %291 : vector<8x1xf32> to vector<8x8xf32>
    %293 = arith.mulf %292, %29 : vector<8x8xf32>
    %294 = vector.extract_strided_slice %271 {offsets = [0, 7], sizes = [8, 1], strides = [1, 1]} : vector<8x8xf32> to vector<8x1xf32>
    %295 = vector.broadcast %294 : vector<8x1xf32> to vector<8x8xf32>
    %296 = arith.mulf %295, %32 : vector<8x8xf32>
    %297 = arith.addf %272, %275 : vector<8x8xf32>
    %298 = arith.addf %278, %281 : vector<8x8xf32>
    %299 = arith.addf %284, %287 : vector<8x8xf32>
    %300 = arith.addf %290, %293 : vector<8x8xf32>
    %301 = arith.addf %297, %298 : vector<8x8xf32>
    %302 = arith.addf %299, %300 : vector<8x8xf32>
    %303 = arith.addf %301, %302 : vector<8x8xf32>
    %304 = arith.addf %303, %296 : vector<8x8xf32>
    %305 = math.tanh %304 : vector<8x8xf32>
    %c0_6 = arith.constant 0 : index
    %c0_7 = arith.constant 0 : index
    %306 = vector.load %arg3[%c0_6, %c0_7] : memref<8x128xf32, #tpu.memory_space<vmem>>, vector<8x128xf32>
    %cst_8 = arith.constant dense<0.000000e+00> : vector<8x128xf32>
    %307 = tpu.matmul %305, %306, %cst_8 {dimension_numbers = #tpu.dot_dimension_numbers<[1], [0], [0], [1], [0, 0, 1, 1], [], []>} : vector<8x8xf32>, vector<8x128xf32>, vector<8x128xf32> -> vector<8x128xf32>
    %c0_9 = arith.constant 0 : index
    %c0_10 = arith.constant 0 : index
    %308 = vector.load %arg4[%c0_9, %c0_10] : memref<1x128xf32, #tpu.memory_space<vmem>>, vector<1x128xf32>
    %309 = vector.broadcast %308 : vector<1x128xf32> to vector<8x128xf32>
    %310 = arith.addf %307, %309 : vector<8x128xf32>
    %c0_11 = arith.constant 0 : index
    %c0_12 = arith.constant 0 : index
    %311 = vector.load %arg5[%c0_11, %c0_12] : memref<8x128xf32, #tpu.memory_space<vmem>>, vector<8x128xf32>
    tpu.vector_store %arg5[%c0_11, %c0_12], %310 {strides = array<i32>} : memref<8x128xf32, #tpu.memory_space<vmem>>, vector<8x128xf32>,
    return
  }
}

</mosaic_0001>

<llo_original>
// kernel: tpu_custom_call.1
$region0: #{tpu_custom_call.1}
  #allocation0 [shape = 'u32[]', space=smem, size = 0x4, offset = 0x4, fixed_abs, tag = 'smem constant byte address 0x4 - core index']
  #allocation1 [shape = 'u32[72,128]{1,0:T(1,128)}', space=vmem, size = 0x9000, scoped, tag = 'internal scratch']
  %s0 = inlined_call_operand.vmem [shape: s32[64,1], index: 0, kind: input, shape index: {}]
  %s1 = inlined_call_operand.vmem [shape: f32[30,8], index: 1, kind: input, shape index: {}]
  %s2 = inlined_call_operand.vmem [shape: f32[8,8], index: 2, kind: input, shape index: {}]
  %s3 = inlined_call_operand.vmem [shape: f32[8,128], index: 3, kind: input, shape index: {}]
  %s4 = inlined_call_operand.vmem [shape: f32[1,128], index: 4, kind: input, shape index: {}]
  %s5 = inlined_call_operand.hbm [shape: f32[8,128], index: 5, kind: output, shape index: {}]
  %s6 = sld [smem:[#allocation0]]
  $region30: #{tpu_custom_call.1} parent=0
    _
  %s8 = ssub.s32 1, %s6
  %s9 = scalar_select 0, %s8, %s6
  $region1: #{tpu_custom_call.1} parent=0
    #allocation2 [shape = 'u8[4096]{0}', space=vmem, size = 0x1000, scoped, tag = 'output window, operand 0, single buffered']
    #allocation3 [shape = 's32[1]{0}', space=sflag, size = 0x4, scoped, tag = 'scoped memory for tpu_custom_call.1']
    %10 = vsyncpa [#allocation3], 0
    // Predicated region
    $region2: #{tpu_custom_call.1} parent=1 // pred_check
      _
    $region3: #{tpu_custom_call.1} parent=1 // pred_check_branch
      %12 = sbr.rel (0) target = $region5
    $region4: #{tpu_custom_call.1} parent=1 // pred_region
      _
    $region5: #{tpu_custom_call.1} parent=1 // pred_fallthru
      _
    // Predicated region
    $region6: #{tpu_custom_call.1} parent=1 // pred_check
      _
    $region7: #{tpu_custom_call.1} parent=1 // pred_check_branch
      %14 = sbr.rel (0) target = $region9
    $region8: #{tpu_custom_call.1} parent=1 // pred_region
      _
    $region9: #{tpu_custom_call.1} parent=1 // pred_fallthru
      _
    // Predicated region
    $region10: #{tpu_custom_call.1} parent=1 // pred_check
      _
    $region11: #{tpu_custom_call.1} parent=1 // pred_check_branch
      %16 = sbr.rel (0) target = $region13
    $region12: #{tpu_custom_call.1} parent=1 // pred_region
      _
    $region13: #{tpu_custom_call.1} parent=1 // pred_fallthru
      _
    // Predicated region
    $region14: #{tpu_custom_call.1} parent=1 // pred_check
      _
    $region15: #{tpu_custom_call.1} parent=1 // pred_check_branch
      %18 = sbr.rel (0) target = $region17
    $region16: #{tpu_custom_call.1} parent=1 // pred_region
      _
    $region17: #{tpu_custom_call.1} parent=1 // pred_fallthru
      _
    // Predicated region
    $region18: #{tpu_custom_call.1} parent=1 // pred_check
      _
    $region19: #{tpu_custom_call.1} parent=1 // pred_check_branch
      %20 = sbr.rel (0) target = $region21
    $region20: #{tpu_custom_call.1} parent=1 // pred_region
      _
    $region21: #{tpu_custom_call.1} parent=1 // pred_fallthru
      _
    %v21 = vld [vmem:[%s0] sm:$0xff]
    %v22 = vld [vmem:[%s0 + $0x8] sm:$0xff]
    %v23 = vld [vmem:[%s0 + $0x10] sm:$0xff]
    %v24 = vld [vmem:[%s0 + $0x18] sm:$0xff]
    %v25 = vld [vmem:[%s0 + $0x20] sm:$0xff]
    %v26 = vld [vmem:[%s0 + $0x28] sm:$0xff]
    %v27 = vld [vmem:[%s0 + $0x30] sm:$0xff]
    %v28 = vld [vmem:[%s0 + $0x38] sm:$0xff]
    %v29 = vlaneseq
    %v30 = vand.u32 %v29, 127
    %31 = vset.pattern.permute.xlu0 0
    %32 = vperm.xlu0 %31, %v21
    %v33 = vpop.permute.xlu0 %32
    %34 = vset.pattern.permute.xlu0 0
    %35 = vperm.xlu0 %34, %v22
    %v36 = vpop.permute.xlu0 %35
    %37 = vset.pattern.permute.xlu0 0
    %38 = vperm.xlu0 %37, %v23
    %v39 = vpop.permute.xlu0 %38
    %40 = vset.pattern.permute.xlu0 0
    %41 = vperm.xlu0 %40, %v24
    %v42 = vpop.permute.xlu0 %41
    %43 = vset.pattern.permute.xlu0 0
    %44 = vperm.xlu0 %43, %v25
    %v45 = vpop.permute.xlu0 %44
    %46 = vset.pattern.permute.xlu0 0
    %47 = vperm.xlu0 %46, %v26
    %v48 = vpop.permute.xlu0 %47
    %49 = vset.pattern.permute.xlu0 0
    %50 = vperm.xlu0 %49, %v27
    %v51 = vpop.permute.xlu0 %50
    %52 = vset.pattern.permute.xlu0 0
    %53 = vperm.xlu0 %52, %v28
    %v54 = vpop.permute.xlu0 %53
    %vm55 = vcmp.eq.s32.totalorder %v33, %v30
    %vm56 = vcmp.eq.s32.totalorder %v36, %v30
    %vm57 = vcmp.eq.s32.totalorder %v39, %v30
    %vm58 = vcmp.eq.s32.totalorder %v42, %v30
    %vm59 = vcmp.eq.s32.totalorder %v45, %v30
    %vm60 = vcmp.eq.s32.totalorder %v48, %v30
    %vm61 = vcmp.eq.s32.totalorder %v51, %v30
    %vm62 = vcmp.eq.s32.totalorder %v54, %v30
    %v63 = vsel %vm55, 1, 0
    %v64 = vsel %vm56, 1, 0
    %v65 = vsel %vm57, 1, 0
    %v66 = vsel %vm58, 1, 0
    %v67 = vsel %vm59, 1, 0
    %v68 = vsel %vm60, 1, 0
    %v69 = vsel %vm61, 1, 0
    %v70 = vsel %vm62, 1, 0
    %v71 = vcvt.s32.f32 %v63
    %v72 = vcvt.s32.f32 %v64
    %v73 = vcvt.s32.f32 %v65
    %v74 = vcvt.s32.f32 %v66
    %v75 = vcvt.s32.f32 %v67
    %v76 = vcvt.s32.f32 %v68
    %v77 = vcvt.s32.f32 %v69
    %v78 = vcvt.s32.f32 %v70
    %v79 = vld [vmem:[%s1] sm:$0xff]
    %v80 = vld [vmem:[%s1 + $0x8] sm:$0xff]
    %v81 = vld [vmem:[%s1 + $0x10] sm:$0xff]
    %v82 = vld [vmem:[%s1 + $0x18] sm:$0x3f]
    %vm83 = vcmask 244736
    %v85 = vsel %vm83, %v71, 0
    %v88 = vsel %vm83, %v72, 0
    %v91 = vsel %vm83, %v73, 0
    %v94 = vsel %vm83, %v74, 0
    %v97 = vsel %vm83, %v75, 0
    %v100 = vsel %vm83, %v76, 0
    %v103 = vsel %vm83, %v77, 0
    %v106 = vsel %vm83, %v78, 0
    %vm108 = vcmask 1045504
    %v110 = vsel %vm108, %v82, 0
    %112 = vmatpush.msra.mxu0 0.0
    %113 = vmatpush.msra.mxu0 0.0
    %114 = vmatpush.msra.mxu0 0.0
    %115 = vmatpush.msra.mxu0 0.0
    %116 = vmatpush.msra.mxu0 0.0
    %117 = vmatpush.msra.mxu0 0.0
    %118 = vmatpush.msra.mxu0 0.0
    %119 = vmatpush.msra.mxu0 0.0
    %120 = vmatpush.msra.mxu0 0.0
    %121 = vmatpush.msra.mxu0 0.0
    %122 = vmatpush.msra.mxu0 0.0
    %123 = vmatpush.msra.mxu0 0.0
    %124 = vmatpush.msra.mxu0 %v110
    %125 = vmatpush.msra.mxu0 %v81
    %126 = vmatpush.msra.mxu0 %v80
    %127 = vmatpush.msra.mxu0 %v79
    %128 = vmatmul.f32.gmra.mxu0 %v85
    %v129 = vpop.f32.mrf.mxu0
    %v130 = vadd.f32 0.0, %v129
    %131 = vmatmul.f32.gmra.mxu0 %v88
    %v132 = vpop.f32.mrf.mxu0
    %v133 = vadd.f32 0.0, %v132
    %134 = vmatmul.f32.gmra.mxu0 %v91
    %v135 = vpop.f32.mrf.mxu0
    %v136 = vadd.f32 0.0, %v135
    %137 = vmatmul.f32.gmra.mxu0 %v94
    %v138 = vpop.f32.mrf.mxu0
    %v139 = vadd.f32 0.0, %v138
    %140 = vmatmul.f32.gmra.mxu0 %v97
    %v141 = vpop.f32.mrf.mxu0
    %v142 = vadd.f32 0.0, %v141
    %143 = vmatmul.f32.gmra.mxu0 %v100
    %v144 = vpop.f32.mrf.mxu0
    %v145 = vadd.f32 0.0, %v144
    %146 = vmatmul.f32.gmra.mxu0 %v103
    %v147 = vpop.f32.mrf.mxu0
    %v148 = vadd.f32 0.0, %v147
    %149 = vmatmul.f32.gmra.mxu0 %v106
    %v150 = vpop.f32.mrf.mxu0
    %v151 = vadd.f32 0.0, %v150
    %152 = vdwg.mxu0
    %v153 = vld [vmem:[%s2] sm:$0xff]
    %v154 = vperm.slane %v153, 0
    %v155 = vperm.slane %v153, 1
    %v156 = vperm.slane %v153, 2
    %v157 = vperm.slane %v153, 3
    %v158 = vperm.slane %v153, 4
    %v159 = vperm.slane %v153, 5
    %v160 = vperm.slane %v153, 6
    %v161 = vperm.slane %v153, 7
    %v162 = vmul.f32 %v154, 0.0
    %v163 = vmul.f32 %v155, 0.0
    %v164 = vmul.f32 %v156, 0.0
    %v165 = vmul.f32 %v157, 0.0
    %v166 = vmul.f32 %v158, 0.0
    %v167 = vmul.f32 %v159, 0.0
    %v168 = vmul.f32 %v160, 0.0
    %v169 = vmul.f32 %v161, 0.0
    %v170 = vadd.f32 %v130, %v162
    %v171 = vadd.f32 %v163, %v164
    %v172 = vadd.f32 %v165, %v166
    %v173 = vadd.f32 %v167, %v168
    %v174 = vadd.f32 %v170, %v171
    %v175 = vadd.f32 %v172, %v173
    %v176 = vadd.f32 %v174, %v175
    %v177 = vadd.f32 %v176, %v169
    %v178 = vtanh.pop %v177
    %180 = vset.pattern.permute.xlu0 0
    %181 = vperm.xlu0 %180, %v178
    %v182 = vpop.permute.xlu0 %181
    %v184 = vmul.f32 %v182, %v154
    %185 = vset.pattern.permute.xlu0 1
    %186 = vperm.xlu0 %185, %v178
    %v187 = vpop.permute.xlu0 %186
    %v189 = vmul.f32 %v187, %v155
    %190 = vset.pattern.permute.xlu0 2
    %191 = vperm.xlu0 %190, %v178
    %v192 = vpop.permute.xlu0 %191
    %v194 = vmul.f32 %v192, %v156
    %195 = vset.pattern.permute.xlu0 3
    %196 = vperm.xlu0 %195, %v178
    %v197 = vpop.permute.xlu0 %196
    %v199 = vmul.f32 %v197, %v157
    %200 = vset.pattern.permute.xlu0 4
    %201 = vperm.xlu0 %200, %v178
    %v202 = vpop.permute.xlu0 %201
    %v204 = vmul.f32 %v202, %v158
    %205 = vset.pattern.permute.xlu0 5
    %206 = vperm.xlu0 %205, %v178
    %v207 = vpop.permute.xlu0 %206
    %v209 = vmul.f32 %v207, %v159
    %210 = vset.pattern.permute.xlu0 6
    %211 = vperm.xlu0 %210, %v178
    %v212 = vpop.permute.xlu0 %211
    %v214 = vmul.f32 %v212, %v160
    %215 = vset.pattern.permute.xlu0 7
    %216 = vperm.xlu0 %215, %v178
    %v217 = vpop.permute.xlu0 %216
    %v219 = vmul.f32 %v217, %v161
    %v220 = vadd.f32 %v133, %v184
    %v221 = vadd.f32 %v189, %v194
    %v222 = vadd.f32 %v199, %v204
    %v223 = vadd.f32 %v209, %v214
    %v224 = vadd.f32 %v220, %v221
    %v225 = vadd.f32 %v222, %v223
    %v226 = vadd.f32 %v224, %v225
    %v227 = vadd.f32 %v226, %v219
    %v228 = vtanh.pop %v227
    %230 = vset.pattern.permute.xlu0 0
    %231 = vperm.xlu0 %230, %v228
    %v232 = vpop.permute.xlu0 %231
    %v234 = vmul.f32 %v232, %v154
    %235 = vset.pattern.permute.xlu0 1
    %236 = vperm.xlu0 %235, %v228
    %v237 = vpop.permute.xlu0 %236
    %v239 = vmul.f32 %v237, %v155
    %240 = vset.pattern.permute.xlu0 2
    %241 = vperm.xlu0 %240, %v228
    %v242 = vpop.permute.xlu0 %241
    %v244 = vmul.f32 %v242, %v156
    %245 = vset.pattern.permute.xlu0 3
    %246 = vperm.xlu0 %245, %v228
    %v247 = vpop.permute.xlu0 %246
    %v249 = vmul.f32 %v247, %v157
    %250 = vset.pattern.permute.xlu0 4
    %251 = vperm.xlu0 %250, %v228
    %v252 = vpop.permute.xlu0 %251
    %v254 = vmul.f32 %v252, %v158
    %255 = vset.pattern.permute.xlu0 5
    %256 = vperm.xlu0 %255, %v228
    %v257 = vpop.permute.xlu0 %256
    %v259 = vmul.f32 %v257, %v159
    %260 = vset.pattern.permute.xlu0 6
    %261 = vperm.xlu0 %260, %v228
    %v262 = vpop.permute.xlu0 %261
    %v264 = vmul.f32 %v262, %v160
    %265 = vset.pattern.permute.xlu0 7
    %266 = vperm.xlu0 %265, %v228
    %v267 = vpop.permute.xlu0 %266
    %v269 = vmul.f32 %v267, %v161
    %v270 = vadd.f32 %v136, %v234
    %v271 = vadd.f32 %v239, %v244
    %v272 = vadd.f32 %v249, %v254
    %v273 = vadd.f32 %v259, %v264
    %v274 = vadd.f32 %v270, %v271
    %v275 = vadd.f32 %v272, %v273
    %v276 = vadd.f32 %v274, %v275
    %v277 = vadd.f32 %v276, %v269
    %v278 = vtanh.pop %v277
    %280 = vset.pattern.permute.xlu0 0
    %281 = vperm.xlu0 %280, %v278
    %v282 = vpop.permute.xlu0 %281
    %v284 = vmul.f32 %v282, %v154
    %285 = vset.pattern.permute.xlu0 1
    %286 = vperm.xlu0 %285, %v278
    %v287 = vpop.permute.xlu0 %286
    %v289 = vmul.f32 %v287, %v155
    %290 = vset.pattern.permute.xlu0 2
    %291 = vperm.xlu0 %290, %v278
    %v292 = vpop.permute.xlu0 %291
    %v294 = vmul.f32 %v292, %v156
    %295 = vset.pattern.permute.xlu0 3
    %296 = vperm.xlu0 %295, %v278
    %v297 = vpop.permute.xlu0 %296
    %v299 = vmul.f32 %v297, %v157
    %300 = vset.pattern.permute.xlu0 4
    %301 = vperm.xlu0 %300, %v278
    %v302 = vpop.permute.xlu0 %301
    %v304 = vmul.f32 %v302, %v158
    %305 = vset.pattern.permute.xlu0 5
    %306 = vperm.xlu0 %305, %v278
    %v307 = vpop.permute.xlu0 %306
    %v309 = vmul.f32 %v307, %v159
    %310 = vset.pattern.permute.xlu0 6
    %311 = vperm.xlu0 %310, %v278
    %v312 = vpop.permute.xlu0 %311
    %v314 = vmul.f32 %v312, %v160
    %315 = vset.pattern.permute.xlu0 7
    %316 = vperm.xlu0 %315, %v278
    %v317 = vpop.permute.xlu0 %316
    %v319 = vmul.f32 %v317, %v161
    %v320 = vadd.f32 %v139, %v284
    %v321 = vadd.f32 %v289, %v294
    %v322 = vadd.f32 %v299, %v304
    %v323 = vadd.f32 %v309, %v314
    %v324 = vadd.f32 %v320, %v321
    %v325 = vadd.f32 %v322, %v323
    %v326 = vadd.f32 %v324, %v325
    %v327 = vadd.f32 %v326, %v319
    %v328 = vtanh.pop %v327
    %330 = vset.pattern.permute.xlu0 0
    %331 = vperm.xlu0 %330, %v328
    %v332 = vpop.permute.xlu0 %331
    %v334 = vmul.f32 %v332, %v154
    %335 = vset.pattern.permute.xlu0 1
    %336 = vperm.xlu0 %335, %v328
    %v337 = vpop.permute.xlu0 %336
    %v339 = vmul.f32 %v337, %v155
    %340 = vset.pattern.permute.xlu0 2
    %341 = vperm.xlu0 %340, %v328
    %v342 = vpop.permute.xlu0 %341
    %v344 = vmul.f32 %v342, %v156
    %345 = vset.pattern.permute.xlu0 3
    %346 = vperm.xlu0 %345, %v328
    %v347 = vpop.permute.xlu0 %346
    %v349 = vmul.f32 %v347, %v157
    %350 = vset.pattern.permute.xlu0 4
    %351 = vperm.xlu0 %350, %v328
    %v352 = vpop.permute.xlu0 %351
    %v354 = vmul.f32 %v352, %v158
    %355 = vset.pattern.permute.xlu0 5
    %356 = vperm.xlu0 %355, %v328
    %v357 = vpop.permute.xlu0 %356
    %v359 = vmul.f32 %v357, %v159
    %360 = vset.pattern.permute.xlu0 6
    %361 = vperm.xlu0 %360, %v328
    %v362 = vpop.permute.xlu0 %361
    %v364 = vmul.f32 %v362, %v160
    %365 = vset.pattern.permute.xlu0 7
    %366 = vperm.xlu0 %365, %v328
    %v367 = vpop.permute.xlu0 %366
    %v369 = vmul.f32 %v367, %v161
    %v370 = vadd.f32 %v142, %v334
    %v371 = vadd.f32 %v339, %v344
    %v372 = vadd.f32 %v349, %v354
    %v373 = vadd.f32 %v359, %v364
    %v374 = vadd.f32 %v370, %v371
    %v375 = vadd.f32 %v372, %v373
    %v376 = vadd.f32 %v374, %v375
    %v377 = vadd.f32 %v376, %v369
    %v378 = vtanh.pop %v377
    %380 = vset.pattern.permute.xlu0 0
    %381 = vperm.xlu0 %380, %v378
    %v382 = vpop.permute.xlu0 %381
    %v384 = vmul.f32 %v382, %v154
    %385 = vset.pattern.permute.xlu0 1
    %386 = vperm.xlu0 %385, %v378
    %v387 = vpop.permute.xlu0 %386
    %v389 = vmul.f32 %v387, %v155
    %390 = vset.pattern.permute.xlu0 2
    %391 = vperm.xlu0 %390, %v378
    %v392 = vpop.permute.xlu0 %391
    %v394 = vmul.f32 %v392, %v156
    %395 = vset.pattern.permute.xlu0 3
    %396 = vperm.xlu0 %395, %v378
    %v397 = vpop.permute.xlu0 %396
    %v399 = vmul.f32 %v397, %v157
    %400 = vset.pattern.permute.xlu0 4
    %401 = vperm.xlu0 %400, %v378
    %v402 = vpop.permute.xlu0 %401
    %v404 = vmul.f32 %v402, %v158
    %405 = vset.pattern.permute.xlu0 5
    %406 = vperm.xlu0 %405, %v378
    %v407 = vpop.permute.xlu0 %406
    %v409 = vmul.f32 %v407, %v159
    %410 = vset.pattern.permute.xlu0 6
    %411 = vperm.xlu0 %410, %v378
    %v412 = vpop.permute.xlu0 %411
    %v414 = vmul.f32 %v412, %v160
    %415 = vset.pattern.permute.xlu0 7
    %416 = vperm.xlu0 %415, %v378
    %v417 = vpop.permute.xlu0 %416
    %v419 = vmul.f32 %v417, %v161
    %v420 = vadd.f32 %v145, %v384
    %v421 = vadd.f32 %v389, %v394
    %v422 = vadd.f32 %v399, %v404
    %v423 = vadd.f32 %v409, %v414
    %v424 = vadd.f32 %v420, %v421
    %v425 = vadd.f32 %v422, %v423
    %v426 = vadd.f32 %v424, %v425
    %v427 = vadd.f32 %v426, %v419
    %v428 = vtanh.pop %v427
    %430 = vset.pattern.permute.xlu0 0
    %431 = vperm.xlu0 %430, %v428
    %v432 = vpop.permute.xlu0 %431
    %v434 = vmul.f32 %v432, %v154
    %435 = vset.pattern.permute.xlu0 1
    %436 = vperm.xlu0 %435, %v428
    %v437 = vpop.permute.xlu0 %436
    %v439 = vmul.f32 %v437, %v155
    %440 = vset.pattern.permute.xlu0 2
    %441 = vperm.xlu0 %440, %v428
    %v442 = vpop.permute.xlu0 %441
    %v444 = vmul.f32 %v442, %v156
    %445 = vset.pattern.permute.xlu0 3
    %446 = vperm.xlu0 %445, %v428
    %v447 = vpop.permute.xlu0 %446
    %v449 = vmul.f32 %v447, %v157
    %450 = vset.pattern.permute.xlu0 4
    %451 = vperm.xlu0 %450, %v428
    %v452 = vpop.permute.xlu0 %451
    %v454 = vmul.f32 %v452, %v158
    %455 = vset.pattern.permute.xlu0 5
    %456 = vperm.xlu0 %455, %v428
    %v457 = vpop.permute.xlu0 %456
    %v459 = vmul.f32 %v457, %v159
    %460 = vset.pattern.permute.xlu0 6
    %461 = vperm.xlu0 %460, %v428
    %v462 = vpop.permute.xlu0 %461
    %v464 = vmul.f32 %v462, %v160
    %465 = vset.pattern.permute.xlu0 7
    %466 = vperm.xlu0 %465, %v428
    %v467 = vpop.permute.xlu0 %466
    %v469 = vmul.f32 %v467, %v161
    %v470 = vadd.f32 %v148, %v434
    %v471 = vadd.f32 %v439, %v444
    %v472 = vadd.f32 %v449, %v454
    %v473 = vadd.f32 %v459, %v464
    %v474 = vadd.f32 %v470, %v471
    %v475 = vadd.f32 %v472, %v473
    %v476 = vadd.f32 %v474, %v475
    %v477 = vadd.f32 %v476, %v469
    %v478 = vtanh.pop %v477
    %480 = vset.pattern.permute.xlu0 0
    %481 = vperm.xlu0 %480, %v478
    %v482 = vpop.permute.xlu0 %481
    %v484 = vmul.f32 %v482, %v154
    %485 = vset.pattern.permute.xlu0 1
    %486 = vperm.xlu0 %485, %v478
    %v487 = vpop.permute.xlu0 %486
    %v489 = vmul.f32 %v487, %v155
    %490 = vset.pattern.permute.xlu0 2
    %491 = vperm.xlu0 %490, %v478
    %v492 = vpop.permute.xlu0 %491
    %v494 = vmul.f32 %v492, %v156
    %495 = vset.pattern.permute.xlu0 3
    %496 = vperm.xlu0 %495, %v478
    %v497 = vpop.permute.xlu0 %496
    %v499 = vmul.f32 %v497, %v157
    %500 = vset.pattern.permute.xlu0 4
    %501 = vperm.xlu0 %500, %v478
    %v502 = vpop.permute.xlu0 %501
    %v504 = vmul.f32 %v502, %v158
    %505 = vset.pattern.permute.xlu0 5
    %506 = vperm.xlu0 %505, %v478
    %v507 = vpop.permute.xlu0 %506
    %v509 = vmul.f32 %v507, %v159
    %510 = vset.pattern.permute.xlu0 6
    %511 = vperm.xlu0 %510, %v478
    %v512 = vpop.permute.xlu0 %511
    %v514 = vmul.f32 %v512, %v160
    %515 = vset.pattern.permute.xlu0 7
    %516 = vperm.xlu0 %515, %v478
    %v517 = vpop.permute.xlu0 %516
    %v519 = vmul.f32 %v517, %v161
    %v520 = vadd.f32 %v151, %v484
    %v521 = vadd.f32 %v489, %v494
    %v522 = vadd.f32 %v499, %v504
    %v523 = vadd.f32 %v509, %v514
    %v524 = vadd.f32 %v520, %v521
    %v525 = vadd.f32 %v522, %v523
    %v526 = vadd.f32 %v524, %v525
    %v527 = vadd.f32 %v526, %v519
    %v528 = vtanh.pop %v527
    %v529 = vld [vmem:[%s3] sm:$0xff]
    %v530 = vld [vmem:[%s4] sm:$0x1]
    %v532 = vperm.slane %v530, 0
    %vm534 = vcmask 64512
    %v536 = vsel %vm534, %v528, 0
    %538 = vmatpush.msra.mxu0 0.0
    %539 = vmatpush.msra.mxu0 0.0
    %540 = vmatpush.msra.mxu0 0.0
    %541 = vmatpush.msra.mxu0 0.0
    %542 = vmatpush.msra.mxu0 0.0
    %543 = vmatpush.msra.mxu0 0.0
    %544 = vmatpush.msra.mxu0 0.0
    %545 = vmatpush.msra.mxu0 0.0
    %546 = vmatpush.msra.mxu0 0.0
    %547 = vmatpush.msra.mxu0 0.0
    %548 = vmatpush.msra.mxu0 0.0
    %549 = vmatpush.msra.mxu0 0.0
    %550 = vmatpush.msra.mxu0 0.0
    %551 = vmatpush.msra.mxu0 0.0
    %552 = vmatpush.msra.mxu0 0.0
    %553 = vmatpush.msra.mxu0 %v529
    %554 = vmatmul.f32.gmra.mxu0 %v536
    %v555 = vpop.f32.mrf.mxu0
    %v556 = vadd.f32 %v532, %v555
    %557 = vdwg.mxu0
    %558 = vst [vmem:[#allocation2] sm:$0xff] %v556
    // Predicated region
    $region22: #{tpu_custom_call.1} parent=1 // pred_check
      _
    $region23: #{tpu_custom_call.1} parent=1 // pred_check_branch
      %560 = sbr.rel (0) target = $region25
    $region24: #{tpu_custom_call.1} parent=1 // pred_region
      %562 = vsyncadd [#allocation3], 0
      %s564 = sshll.u32 [#allocation2], 4
      %s565 = int_to_ptr.vmem [resolvable:$true] %s564
      %s566 = sshll.u32 %s5, 4
      %s567 = int_to_ptr.hbm [resolvable:$true] %s566
      %569 = dma.vmem_to_hbm [thread:$0]  %s565, 128, %s567, [#allocation3]
    $region25: #{tpu_custom_call.1} parent=1 // pred_fallthru
      _
    // Predicated region
    $region26: #{tpu_custom_call.1} parent=1 // pred_check
      _
    $region27: #{tpu_custom_call.1} parent=1 // pred_check_branch
      %571 = sbr.rel (0) target = $region29
    $region28: #{tpu_custom_call.1} parent=1 // pred_region
      %573 = dma.done [#allocation3], 128
    $region29: #{tpu_custom_call.1} parent=1 // pred_fallthru
      _
    %574 = vsyncpa [#allocation3], 1

</llo_original>
